<compile_context>
chip_gen: v7x
topology: tpu7x:2x2x1
jax: 0.10.0
libtpu: 0.0.40
codegen_flags: <defaults>
</compile_context>

<pallas_src>
import functools

import jax
import jax.numpy as jnp
from jax import lax
from jax.experimental import pallas as pl
from jax.experimental.pallas import tpu as pltpu

# Hyper-params from the original `params` dict (InfoGAN-style defaults).
DIS_C_DIM = 10
NUM_CON_C = 2
IN_FEATURES = 1024
HIDDEN = 128
HEAD_OUT = DIS_C_DIM + 2 * NUM_CON_C        # 14 real head columns
HEAD_PAD = 128                              # lane-padded head width (== HIDDEN)
BN_EPS = 1e-5
MAX_TILE = 1024                             # batch rows per tile


def _round_up(n, m):
    return ((n + m - 1) // m) * m


def _vmem_limit_bytes():
    """Generation-aware scoped-VMEM limit: physical capacity minus headroom."""
    try:
        cap = int(pltpu.get_tpu_info().vmem_capacity_bytes)
        # 128 MiB (v5e/v6e) -> 112 MiB; 64 MiB (v7x) -> 48 MiB.
        return max(32 * 1024 * 1024, cap - 16 * 1024 * 1024)
    except Exception:
        return 32 * 1024 * 1024             # conservative fallback


def _finish_tile(h, small_ref, wh_ref, batch, sum_row, sumsq_row):
    """Normalize (global batch stats) -> LeakyReLU(0.1) -> fused heads -> exp."""
    inv_b = jnp.float32(1.0 / batch)
    mean = sum_row * inv_b
    # One-pass E[h^2] - mean^2 in f32; max(.,0) guards cancellation.
    # TODO(synk): a shifted / two-pass variance would be more robust for
    # features with |mean| >> std.
    var = jnp.maximum(sumsq_row * inv_b - mean * mean, 0.0)
    hn = (h - mean) * lax.rsqrt(var + BN_EPS)
    hn = hn * small_ref[1:2, :] + small_ref[2:3, :]          # gamma, beta
    a = jnp.where(hn >= 0.0, hn, 0.1 * hn)                   # LeakyReLU(0.1)
    y = jnp.dot(a.astype(jnp.bfloat16), wh_ref[...],
                preferred_element_type=jnp.float32)
    y = y + small_ref[3:4, :]                                # packed head biases
    sel = small_ref[4:5, :]                                  # 0/1 exp-column selector
    return jnp.where(sel != 0.0, jnp.exp(y), y)


def _qhead_single_kernel(x_ref, w1_ref, small_ref, wh_ref, out_ref, *,
                         batch, tile, ragged):
    """Fast path: whole (padded) batch fits one tile; one invocation."""
    h = jnp.dot(x_ref[...].astype(jnp.bfloat16), w1_ref[...],
                preferred_element_type=jnp.float32) + small_ref[0:1, :]
    if ragged:                                               # static Python bool
        gidx = lax.broadcasted_iota(jnp.int32, (tile, 1), 0)
        hv = jnp.where(gidx < batch, h, 0.0)
    else:
        hv = h
    s = jnp.sum(hv, axis=0, keepdims=True)
    ss = jnp.sum(hv * h, axis=0, keepdims=True)
    out_ref[...] = _finish_tile(h, small_ref, wh_ref, batch, s, ss
                                ).astype(out_ref.dtype)


def _qhead_two_phase_kernel(x_ref, w1_ref, small_ref, wh_ref, out_ref,
                            stat_ref, *h_scratch, batch, tile, ragged):
    """grid = (2, num_tiles): axis 0 = phase, axis 1 = batch tile.

    phase 0: h = x @ w1 + b1 per tile, (optionally) stash h as bf16 in VMEM,
             accumulate the global per-feature sum / sum-of-squares.
    phase 1: normalize with the GLOBAL batch stats, LeakyReLU(0.1), fused head
             matmul + bias, exp() on the var columns, write one lane-dense
             (tile, 128) bf16 output block.
    If the stash does not fit VMEM (h_scratch empty), x is re-streamed and
    fc1 recomputed in phase 1 (correct for any batch size, 2x x-bytes).
    """
    stash = bool(h_scratch)
    h_ref = h_scratch[0] if stash else None
    phase = pl.program_id(0)
    i = pl.program_id(1)

    def fc1():
        return jnp.dot(x_ref[...].astype(jnp.bfloat16), w1_ref[...],
                       preferred_element_type=jnp.float32) + small_ref[0:1, :]

    @pl.when(phase == 0)
    def _accumulate():
        @pl.when(i == 0)
        def _init():
            stat_ref[...] = jnp.zeros_like(stat_ref)

        h = fc1()
        if stash:
            h_ref[i] = h.astype(jnp.bfloat16)                # bf16 stash (halved VMEM)
        if ragged:
            gidx = i * tile + lax.broadcasted_iota(jnp.int32, (tile, 1), 0)
            hv = jnp.where(gidx < batch, h, 0.0)
        else:
            hv = h
        # TODO(synk): on v7x an (8,128) partial accumulator with a single
        # final cross-sublane reduce would cheapen this VPU/XLU work.
        stat_ref[0:1, :] += jnp.sum(hv, axis=0, keepdims=True)
        stat_ref[1:2, :] += jnp.sum(hv * h, axis=0, keepdims=True)

    @pl.when(phase == 1)
    def _normalize_and_heads():
        if stash:
            h = h_ref[i].astype(jnp.float32)
        else:
            h = fc1()                                        # recompute fallback
        out_ref[...] = _finish_tile(h, small_ref, wh_ref, batch,
                                    stat_ref[0:1, :], stat_ref[1:2, :]
                                    ).astype(out_ref.dtype)


def pack_params(p):
    """One-time conversion of the logical f32 params into the kernel layout."""
    small = jnp.zeros((8, HIDDEN), jnp.float32)
    small = small.at[0].set(p["b1"].reshape(-1))
    small = small.at[1].set(p["gamma"].reshape(-1))
    small = small.at[2].set(p["beta"].reshape(-1))
    head_b = jnp.concatenate([p["bd"].reshape(-1), p["bm"].reshape(-1),
                              p["bv"].reshape(-1)])
    small = small.at[3, :HEAD_OUT].set(head_b)
    # Row 4: 0/1 selector for the columns that get exp() (the var head).
    small = small.at[4, DIS_C_DIM + NUM_CON_C:HEAD_OUT].set(1.0)

    whead = jnp.zeros((HIDDEN, HEAD_PAD), jnp.float32)
    whead = whead.at[:, :DIS_C_DIM].set(p["wd"])
    whead = whead.at[:, DIS_C_DIM:DIS_C_DIM + NUM_CON_C].set(p["wm"])
    whead = whead.at[:, DIS_C_DIM + NUM_CON_C:HEAD_OUT].set(p["wv"])

    return {
        "w1": p["w1"].astype(jnp.bfloat16),        # (1024, 128) bf16
        "small": small,                            # (8, 128)   f32
        "whead": whead.astype(jnp.bfloat16),       # (128, 128) bf16
    }


def qhead_forward(x, packed):
    """x: anything that flattens to (-1, 1024). Returns (disc_logits, mu, var).

    Training-mode BatchNorm semantics (batch statistics). B == 1 gives
    var == 0 and is degenerate (PyTorch raises in that case).
    Pass x as bf16 for best performance: the kernel is x-DMA-bound.
    """
    x = x.reshape(-1, IN_FEATURES)
    B = x.shape[0]

    if B <= MAX_TILE:
        tile = max(16, _round_up(B, 16))           # bf16 (16,128) sublane granularity
    else:
        tile = MAX_TILE
    bpad = _round_up(B, tile)
    num_tiles = bpad // tile
    ragged = bpad != B
    if ragged:
        x = jnp.pad(x, ((0, bpad - B), (0, 0)))

    vmem_limit = _vmem_limit_bytes()
    out_shape = jax.ShapeDtypeStruct((bpad, HEAD_PAD), jnp.bfloat16)

    if num_tiles == 1:
        # ----- single-tile fast path: one invocation, no phases, no stash -----
        kernel = functools.partial(_qhead_single_kernel,
                                   batch=B, tile=tile, ragged=ragged)
        out = pl.pallas_call(
            kernel,
            out_shape=out_shape,
            grid_spec=pltpu.PrefetchScalarGridSpec(
                num_scalar_prefetch=0,
                grid=(1,),
                in_specs=[
                    pl.BlockSpec((tile, IN_FEATURES), lambda i: (0, 0)),
                    pl.BlockSpec((IN_FEATURES, HIDDEN), lambda i: (0, 0)),
                    pl.BlockSpec((8, HIDDEN), lambda i: (0, 0)),
                    pl.BlockSpec((HIDDEN, HEAD_PAD), lambda i: (0, 0)),
                ],
                out_specs=pl.BlockSpec((tile, HEAD_PAD), lambda i: (0, 0)),
            ),
            compiler_params=pltpu.CompilerParams(
                dimension_semantics=("arbitrary",),
                vmem_limit_bytes=vmem_limit,
            ),
        )(x, packed["w1"], packed["small"], packed["whead"])
    else:
        # ----- multi-tile two-phase path -----
        # VMEM budget check: bf16 h stash vs. recompute fallback.
        bpe = jnp.dtype(x.dtype).itemsize
        fixed_bytes = (tile * IN_FEATURES * bpe * 2            # x tile (double-buffered)
                       + IN_FEATURES * HIDDEN * 2 * 2          # w1 bf16
                       + 8 * HIDDEN * 4 * 2                    # small pack
                       + HIDDEN * HEAD_PAD * 2 * 2             # fused head weights
                       + tile * HEAD_PAD * 2 * 2               # out tile bf16
                       + 2 * HIDDEN * 4)                       # stats
        stash_bytes = bpad * HIDDEN * 2                        # bf16 h stash
        use_stash = (fixed_bytes + stash_bytes) <= int(vmem_limit * 0.85)

        scratch = [pltpu.VMEM((2, HIDDEN), jnp.float32)]       # sum / sumsq
        if use_stash:
            scratch.append(pltpu.VMEM((num_tiles, tile, HIDDEN), jnp.bfloat16))
            # x: stream tiles in phase 0; pin to the last tile in phase 1 so it
            # is never re-fetched (phase 1 reads h from the VMEM stash).
            x_map = lambda p, i: ((1 - p) * i + p * (num_tiles - 1), 0)
        else:
            # Fallback: re-stream x in phase 1 and recompute fc1 there.
            x_map = lambda p, i: (i, 0)

        kernel = functools.partial(_qhead_two_phase_kernel,
                                   batch=B, tile=tile, ragged=ragged)
        out = pl.pallas_call(
            kernel,
            out_shape=out_shape,
            grid_spec=pltpu.PrefetchScalarGridSpec(
                num_scalar_prefetch=0,
                grid=(2, num_tiles),
                in_specs=[
                    pl.BlockSpec((tile, IN_FEATURES), x_map),
                    pl.BlockSpec((IN_FEATURES, HIDDEN), lambda p, i: (0, 0)),
                    pl.BlockSpec((8, HIDDEN), lambda p, i: (0, 0)),
                    pl.BlockSpec((HIDDEN, HEAD_PAD), lambda p, i: (0, 0)),
                ],
                # Block index pinned to 0 during phase 0 so no garbage
                # writebacks happen before the tile is written in phase 1.
                out_specs=pl.BlockSpec((tile, HEAD_PAD), lambda p, i: (p * i, 0)),
                scratch_shapes=scratch,
            ),
            compiler_params=pltpu.CompilerParams(
                # Global BN stats couple all tiles -> single-core grid.
                # TODO(synk): v7x megacore split (per-core partial stats via
                # CMEM/VMEM_SHARED + core_barrier) would use the 2nd TensorCore.
                dimension_semantics=("arbitrary", "arbitrary"),
                vmem_limit_bytes=vmem_limit,
            ),
        )(x, packed["w1"], packed["small"], packed["whead"])

    out = out[:B].astype(jnp.float32)
    disc = out[:, :DIS_C_DIM]
    mu = out[:, DIS_C_DIM:DIS_C_DIM + NUM_CON_C]
    var = out[:, DIS_C_DIM + NUM_CON_C:HEAD_OUT]
    # Match torch .squeeze() semantics (drops all size-1 dims).
    return jnp.squeeze(disc), jnp.squeeze(mu), jnp.squeeze(var)


def init_params(key):
    ks = jax.random.split(key, 8)

    def lin(kw, fan_in, fan_out):
        scale = 1.0 / jnp.sqrt(jnp.float32(fan_in))
        return jax.random.uniform(kw, (fan_in, fan_out), jnp.float32, -scale, scale)

    return {
        "w1": lin(ks[0], IN_FEATURES, HIDDEN),
        "b1": jax.random.uniform(ks[1], (1, HIDDEN), jnp.float32, -0.03, 0.03),
        "gamma": jnp.ones((1, HIDDEN), jnp.float32),
        "beta": jnp.zeros((1, HIDDEN), jnp.float32),
        "wd": lin(ks[2], HIDDEN, DIS_C_DIM),
        "bd": jax.random.uniform(ks[3], (1, DIS_C_DIM), jnp.float32, -0.08, 0.08),
        "wm": lin(ks[4], HIDDEN, NUM_CON_C),
        "bm": jax.random.uniform(ks[5], (1, NUM_CON_C), jnp.float32, -0.08, 0.08),
        "wv": lin(ks[6], HIDDEN, NUM_CON_C),
        "bv": jax.random.uniform(ks[7], (1, NUM_CON_C), jnp.float32, -0.08, 0.08),
    }


def _reference(x, p):
    # Pure-JAX reference mirroring the kernel's bf16 weight/activation casts.
    x = x.reshape(-1, IN_FEATURES).astype(jnp.bfloat16)
    h = jnp.dot(x, p["w1"].astype(jnp.bfloat16),
                preferred_element_type=jnp.float32) + p["b1"]
    mean = jnp.mean(h, axis=0, keepdims=True)
    var = jnp.mean((h - mean) ** 2, axis=0, keepdims=True)
    hn = (h - mean) / jnp.sqrt(var + BN_EPS) * p["gamma"] + p["beta"]
    a = jnp.where(hn >= 0, hn, 0.1 * hn).astype(jnp.bfloat16)
    d = jnp.dot(a, p["wd"].astype(jnp.bfloat16),
                preferred_element_type=jnp.float32) + p["bd"]
    m = jnp.dot(a, p["wm"].astype(jnp.bfloat16),
                preferred_element_type=jnp.float32) + p["bm"]
    v = jnp.exp(jnp.dot(a, p["wv"].astype(jnp.bfloat16),
                        preferred_element_type=jnp.float32) + p["bv"])
    return jnp.squeeze(d), jnp.squeeze(m), jnp.squeeze(v)


if __name__ == "__main__":
    key = jax.random.PRNGKey(0)
    k_x, k_p = jax.random.split(key)
    # Input shaped like the (B, 1024, 1, 1) feature map the discriminator body
    # produces; kept bf16 end-to-end so no per-forward upcast copy is needed.
    x = jax.random.normal(k_x, (8, IN_FEATURES, 1, 1),
                          dtype=jnp.float32).astype(jnp.bfloat16)
    params = init_params(k_p)
    packed = pack_params(params)   # one-time param packing

    disc, mu, var = qhead_forward(x, packed)
    jax.block_until_ready((disc, mu, var))

    rd, rm, rv = _reference(x, params)
    assert jnp.allclose(disc, rd, atol=2e-2, rtol=2e-2), "disc mismatch"
    assert jnp.allclose(mu, rm, atol=2e-2, rtol=2e-2), "mu mismatch"
    assert jnp.allclose(var, rv, atol=2e-2, rtol=2e-2), "var mismatch"

    print("KERNEL_OK")
</pallas_src>

<mosaic_0001>
module attributes {stable_mosaic.version = 11 : i64} {
  func.func @_qhead_single_kernel(%arg0: i32, %arg1: memref<16x1024xbf16, #tpu.memory_space<vmem>>, %arg2: memref<1024x128xbf16, #tpu.memory_space<vmem>>, %arg3: memref<8x128xf32, #tpu.memory_space<vmem>>, %arg4: memref<128x128xbf16, #tpu.memory_space<vmem>>, %arg5: memref<16x128xbf16, #tpu.memory_space<vmem>>) attributes {dimension_semantics = [#tpu.dimension_semantics<arbitrary>], iteration_bounds = array<i64: 1>, scalar_prefetch = 0 : i64, scratch_operands = 0 : i64, tpu.core_type = #tpu.core_type<tc>, window_params = [{pipeline_mode = #tpu.pipeline_mode<synchronous>, transform_indices = @transform_0, window_bounds = array<i64: 16, 1024>}, {pipeline_mode = #tpu.pipeline_mode<synchronous>, transform_indices = @transform_1, window_bounds = array<i64: 1024, 128>}, {pipeline_mode = #tpu.pipeline_mode<synchronous>, transform_indices = @transform_2, window_bounds = array<i64: 8, 128>}, {pipeline_mode = #tpu.pipeline_mode<synchronous>, transform_indices = @transform_3, window_bounds = array<i64: 128, 128>}, {pipeline_mode = #tpu.pipeline_mode<synchronous>, transform_indices = @transform_4, window_bounds = array<i64: 16, 128>}]} {
    %c0 = arith.constant 0 : index
    %c0_0 = arith.constant 0 : index
    %0 = vector.load %arg1[%c0, %c0_0] : memref<16x1024xbf16, #tpu.memory_space<vmem>>, vector<16x1024xbf16>
    %c0_1 = arith.constant 0 : index
    %c0_2 = arith.constant 0 : index
    %1 = vector.load %arg2[%c0_1, %c0_2] : memref<1024x128xbf16, #tpu.memory_space<vmem>>, vector<1024x128xbf16>
    %cst = arith.constant dense<0.000000e+00> : vector<16x128xf32>
    %2 = tpu.matmul %0, %1, %cst {dimension_numbers = #tpu.dot_dimension_numbers<[1], [0], [0], [1], [0, 0, 1, 1], [], []>} : vector<16x1024xbf16>, vector<1024x128xbf16>, vector<16x128xf32> -> vector<16x128xf32>
    %c0_3 = arith.constant 0 : index
    %c0_4 = arith.constant 0 : index
    %3 = vector.load %arg3[%c0_3, %c0_4] : memref<8x128xf32, #tpu.memory_space<vmem>>, vector<1x128xf32>
    %4 = vector.broadcast %3 : vector<1x128xf32> to vector<16x128xf32>
    %5 = arith.addf %2, %4 : vector<16x128xf32>
    %6 = tpu.iota {dimensions = array<i32: 0>} : vector<16x1xi32>
    %c8_i32 = arith.constant 8 : i32
    %7 = vector.broadcast %c8_i32 : i32 to vector<16x1xi32>
    %8 = arith.cmpi slt, %6, %7 : vector<16x1xi32>
    %cst_5 = arith.constant 0.000000e+00 : f32
    %9 = vector.shape_cast %8 : vector<16x1xi1> to vector<16x1xi1>
    %10 = vector.broadcast %9 : vector<16x1xi1> to vector<16x128xi1>
    %11 = vector.broadcast %cst_5 : f32 to vector<16x128xf32>
    %12 = arith.select %10, %5, %11 : vector<16x128xi1>, vector<16x128xf32>
    %cst_6 = arith.constant dense<0.000000e+00> : vector<128xf32>
    %13 = vector.multi_reduction <add>, %12, %cst_6 [0] : vector<16x128xf32> to vector<128xf32>
    %14 = vector.shape_cast %13 : vector<128xf32> to vector<1x128xf32>
    %15 = arith.mulf %12, %5 : vector<16x128xf32>
    %cst_7 = arith.constant dense<0.000000e+00> : vector<128xf32>
    %16 = vector.multi_reduction <add>, %15, %cst_7 [0] : vector<16x128xf32> to vector<128xf32>
    %17 = vector.shape_cast %16 : vector<128xf32> to vector<1x128xf32>
    %cst_8 = arith.constant 1.250000e-01 : f32
    %18 = vector.broadcast %cst_8 : f32 to vector<1x128xf32>
    %19 = arith.mulf %14, %18 : vector<1x128xf32>
    %cst_9 = arith.constant 1.250000e-01 : f32
    %20 = vector.broadcast %cst_9 : f32 to vector<1x128xf32>
    %21 = arith.mulf %17, %20 : vector<1x128xf32>
    %22 = arith.mulf %19, %19 : vector<1x128xf32>
    %23 = arith.subf %21, %22 : vector<1x128xf32>
    %cst_10 = arith.constant 0.000000e+00 : f32
    %24 = vector.broadcast %cst_10 : f32 to vector<1x128xf32>
    %25 = arith.maximumf %23, %24 : vector<1x128xf32>
    %26 = vector.broadcast %19 : vector<1x128xf32> to vector<16x128xf32>
    %27 = arith.subf %5, %26 : vector<16x128xf32>
    %cst_11 = arith.constant 9.99999974E-6 : f32
    %28 = vector.broadcast %cst_11 : f32 to vector<1x128xf32>
    %29 = arith.addf %25, %28 : vector<1x128xf32>
    %30 = math.rsqrt %29 : vector<1x128xf32>
    %31 = vector.broadcast %30 : vector<1x128xf32> to vector<16x128xf32>
    %32 = arith.mulf %27, %31 : vector<16x128xf32>
    %c1 = arith.constant 1 : index
    %c0_12 = arith.constant 0 : index
    %33 = vector.load %arg3[%c1, %c0_12] : memref<8x128xf32, #tpu.memory_space<vmem>>, vector<1x128xf32>
    %34 = vector.broadcast %33 : vector<1x128xf32> to vector<16x128xf32>
    %35 = arith.mulf %32, %34 : vector<16x128xf32>
    %c2 = arith.constant 2 : index
    %c0_13 = arith.constant 0 : index
    %36 = vector.load %arg3[%c2, %c0_13] : memref<8x128xf32, #tpu.memory_space<vmem>>, vector<1x128xf32>
    %37 = vector.broadcast %36 : vector<1x128xf32> to vector<16x128xf32>
    %38 = arith.addf %35, %37 : vector<16x128xf32>
    %cst_14 = arith.constant 0.000000e+00 : f32
    %39 = vector.broadcast %cst_14 : f32 to vector<16x128xf32>
    %40 = arith.cmpf oge, %38, %39 : vector<16x128xf32>
    %cst_15 = arith.constant 1.000000e-01 : f32
    %41 = vector.broadcast %cst_15 : f32 to vector<16x128xf32>
    %42 = arith.mulf %41, %38 : vector<16x128xf32>
    %43 = arith.select %40, %38, %42 : vector<16x128xi1>, vector<16x128xf32>
    %44 = arith.truncf %43 : vector<16x128xf32> to vector<16x128xbf16>
    %c0_16 = arith.constant 0 : index
    %c0_17 = arith.constant 0 : index
    %45 = vector.load %arg4[%c0_16, %c0_17] : memref<128x128xbf16, #tpu.memory_space<vmem>>, vector<128x128xbf16>
    %cst_18 = arith.constant dense<0.000000e+00> : vector<16x128xf32>
    %46 = tpu.matmul %44, %45, %cst_18 {dimension_numbers = #tpu.dot_dimension_numbers<[1], [0], [0], [1], [0, 0, 1, 1], [], []>} : vector<16x128xbf16>, vector<128x128xbf16>, vector<16x128xf32> -> vector<16x128xf32>
    %c3 = arith.constant 3 : index
    %c0_19 = arith.constant 0 : index
    %47 = vector.load %arg3[%c3, %c0_19] : memref<8x128xf32, #tpu.memory_space<vmem>>, vector<1x128xf32>
    %48 = vector.broadcast %47 : vector<1x128xf32> to vector<16x128xf32>
    %49 = arith.addf %46, %48 : vector<16x128xf32>
    %c4 = arith.constant 4 : index
    %c0_20 = arith.constant 0 : index
    %50 = vector.load %arg3[%c4, %c0_20] : memref<8x128xf32, #tpu.memory_space<vmem>>, vector<1x128xf32>
    %cst_21 = arith.constant 0.000000e+00 : f32
    %51 = vector.broadcast %cst_21 : f32 to vector<1x128xf32>
    %52 = arith.cmpf one, %50, %51 : vector<1x128xf32>
    %53 = math.exp %49 : vector<16x128xf32>
    %54 = vector.shape_cast %52 : vector<1x128xi1> to vector<1x128xi1>
    %55 = vector.broadcast %54 : vector<1x128xi1> to vector<16x128xi1>
    %56 = arith.select %55, %53, %49 : vector<16x128xi1>, vector<16x128xf32>
    %57 = arith.truncf %56 : vector<16x128xf32> to vector<16x128xbf16>
    %c0_22 = arith.constant 0 : index
    %c0_23 = arith.constant 0 : index
    %58 = vector.load %arg5[%c0_22, %c0_23] : memref<16x128xbf16, #tpu.memory_space<vmem>>, vector<16x128xbf16>
    tpu.vector_store %arg5[%c0_22, %c0_23], %57 {strides = array<i32>} : memref<16x128xbf16, #tpu.memory_space<vmem>>, vector<16x128xbf16>,
    return
  }
  func.func @transform_0(%arg0: i32) -> (i32, i32) {
    %c0_i32 = arith.constant 0 : i32
    %c0_i32_0 = arith.constant 0 : i32
    %c0_i32_1 = arith.constant 0 : i32
    return %c0_i32, %c0_i32_0 : i32, i32
  }
  func.func @transform_1(%arg0: i32) -> (i32, i32) {
    %c0_i32 = arith.constant 0 : i32
    %c0_i32_0 = arith.constant 0 : i32
    %c0_i32_1 = arith.constant 0 : i32
    return %c0_i32, %c0_i32_0 : i32, i32
  }
  func.func @transform_2(%arg0: i32) -> (i32, i32) {
    %c0_i32 = arith.constant 0 : i32
    %c0_i32_0 = arith.constant 0 : i32
    %c0_i32_1 = arith.constant 0 : i32
    return %c0_i32, %c0_i32_0 : i32, i32
  }
  func.func @transform_3(%arg0: i32) -> (i32, i32) {
    %c0_i32 = arith.constant 0 : i32
    %c0_i32_0 = arith.constant 0 : i32
    %c0_i32_1 = arith.constant 0 : i32
    return %c0_i32, %c0_i32_0 : i32, i32
  }
  func.func @transform_4(%arg0: i32) -> (i32, i32) {
    %c0_i32 = arith.constant 0 : i32
    %c0_i32_0 = arith.constant 0 : i32
    %c0_i32_1 = arith.constant 0 : i32
    return %c0_i32, %c0_i32_0 : i32, i32
  }
}

</mosaic_0001>

<llo_original>
// kernel: tpu_custom_call.1
$region0: #{tpu_custom_call.1}
  #allocation0 [shape = 'u32[]', space=smem, size = 0x4, offset = 0x4, fixed_abs, tag = 'smem constant byte address 0x4 - core index']
  #allocation1 [shape = 'u32[144,128]{1,0:T(1,128)}', space=vmem, size = 0x12000, scoped, tag = 'internal scratch']
  %s0 = inlined_call_operand.hbm [shape: bf16[16,1024], index: 0, kind: input, shape index: {}]
  %s1 = inlined_call_operand.hbm [shape: bf16[1024,128], index: 1, kind: input, shape index: {}]
  %s2 = inlined_call_operand.hbm [shape: f32[8,128], index: 2, kind: input, shape index: {}]
  %s3 = inlined_call_operand.hbm [shape: bf16[128,128], index: 3, kind: input, shape index: {}]
  %s4 = inlined_call_operand.hbm [shape: bf16[16,128], index: 4, kind: output, shape index: {}]
  %s5 = sld [smem:[#allocation0]]
  $region42: #{tpu_custom_call.1} parent=0
    _
  %s7 = ssub.s32 1, %s5
  %s8 = scalar_select 0, %s7, %s5
  $region1: #{tpu_custom_call.1} parent=0
    #allocation2 [shape = 'u8[32768]{0}', space=vmem, size = 0x8000, scoped, tag = 'input window, operand 0, single buffered']
    #allocation3 [shape = 's32[1]{0}', space=sflag, size = 0x4, scoped, tag = 'scoped memory for tpu_custom_call.1']
    #allocation4 [shape = 's32[1]{0}', space=sflag, size = 0x4, scoped, tag = 'scoped memory for tpu_custom_call.1']
    #allocation5 [shape = 'u8[262144]{0}', space=vmem, size = 0x40000, scoped, tag = 'input window, operand 1, single buffered']
    #allocation6 [shape = 's32[1]{0}', space=sflag, size = 0x4, scoped, tag = 'scoped memory for tpu_custom_call.1']
    #allocation7 [shape = 'u8[4096]{0}', space=vmem, size = 0x1000, scoped, tag = 'input window, operand 2, single buffered']
    #allocation8 [shape = 'u8[32768]{0}', space=vmem, size = 0x8000, scoped, tag = 'input window, operand 3, single buffered']
    #allocation9 [shape = 's32[1]{0}', space=sflag, size = 0x4, scoped, tag = 'scoped memory for tpu_custom_call.1']
    #allocation10 [shape = 'u8[4096]{0}', space=vmem, size = 0x1000, scoped, tag = 'output window, operand 0, single buffered']
    %9 = vsyncpa [#allocation3], 0
    %10 = vsyncpa [#allocation6], 0
    %11 = vsyncpa [#allocation9], 0
    %12 = vsyncpa [#allocation4], 0
    // Predicated region
    $region2: #{tpu_custom_call.1} parent=1 // pred_check
      _
    $region3: #{tpu_custom_call.1} parent=1 // pred_check_branch
      %14 = sbr.rel (0) target = $region5
    $region4: #{tpu_custom_call.1} parent=1 // pred_region
      %s16 = ssub.s32 1024, 1024
      %17 = vsyncadd [#allocation3], %s16
      %s18 = sshll.u32 [#allocation2], 4
      %s19 = int_to_ptr.vmem [resolvable:$true] %s18
      %24 = dma.hbm_to_vmem [thread:$0]  %s0, 1024, %s19, [#allocation3], 512, 512, 32
    $region5: #{tpu_custom_call.1} parent=1 // pred_fallthru
      _
    // Predicated region
    $region6: #{tpu_custom_call.1} parent=1 // pred_check
      _
    $region7: #{tpu_custom_call.1} parent=1 // pred_check_branch
      %26 = sbr.rel (0) target = $region9
    $region8: #{tpu_custom_call.1} parent=1 // pred_region
      %s28 = ssub.s32 8192, 8192
      %29 = vsyncadd [#allocation6], %s28
      %s30 = sshll.u32 [#allocation5], 4
      %s31 = int_to_ptr.vmem [resolvable:$true] %s30
      %36 = dma.hbm_to_vmem [thread:$0]  %s1, 8192, %s31, [#allocation6], 64, 64, 4
    $region9: #{tpu_custom_call.1} parent=1 // pred_fallthru
      _
    // Predicated region
    $region10: #{tpu_custom_call.1} parent=1 // pred_check
      _
    $region11: #{tpu_custom_call.1} parent=1 // pred_check_branch
      %38 = sbr.rel (0) target = $region13
    $region12: #{tpu_custom_call.1} parent=1 // pred_region
      %s40 = ssub.s32 128, 128
      %41 = vsyncadd [#allocation6], %s40
      %s43 = sshll.u32 [#allocation7], 4
      %s44 = int_to_ptr.vmem [resolvable:$true] %s43
      %46 = dma.hbm_to_vmem [thread:$0]  %s2, 128, %s44, [#allocation6]
    $region13: #{tpu_custom_call.1} parent=1 // pred_fallthru
      _
    // Predicated region
    $region14: #{tpu_custom_call.1} parent=1 // pred_check
      _
    $region15: #{tpu_custom_call.1} parent=1 // pred_check_branch
      %48 = sbr.rel (0) target = $region17
    $region16: #{tpu_custom_call.1} parent=1 // pred_region
      %s50 = ssub.s32 1024, 1024
      %51 = vsyncadd [#allocation9], %s50
      %s52 = sshll.u32 [#allocation8], 4
      %s53 = int_to_ptr.vmem [resolvable:$true] %s52
      %58 = dma.hbm_to_vmem [thread:$0]  %s3, 1024, %s53, [#allocation9], 64, 64, 4
    $region17: #{tpu_custom_call.1} parent=1 // pred_fallthru
      _
    // Predicated region
    $region18: #{tpu_custom_call.1} parent=1 // pred_check
      _
    $region19: #{tpu_custom_call.1} parent=1 // pred_check_branch
      %60 = sbr.rel (0) target = $region21
    $region20: #{tpu_custom_call.1} parent=1 // pred_region
      %61 = dma.done [#allocation3], 1024
    $region21: #{tpu_custom_call.1} parent=1 // pred_fallthru
      _
    // Predicated region
    $region22: #{tpu_custom_call.1} parent=1 // pred_check
      _
    $region23: #{tpu_custom_call.1} parent=1 // pred_check_branch
      %63 = sbr.rel (0) target = $region25
    $region24: #{tpu_custom_call.1} parent=1 // pred_region
      %64 = dma.done [#allocation6], 8192
    $region25: #{tpu_custom_call.1} parent=1 // pred_fallthru
      _
    // Predicated region
    $region26: #{tpu_custom_call.1} parent=1 // pred_check
      _
    $region27: #{tpu_custom_call.1} parent=1 // pred_check_branch
      %66 = sbr.rel (0) target = $region29
    $region28: #{tpu_custom_call.1} parent=1 // pred_region
      %67 = dma.done [#allocation6], 128
    $region29: #{tpu_custom_call.1} parent=1 // pred_fallthru
      _
    // Predicated region
    $region30: #{tpu_custom_call.1} parent=1 // pred_check
      _
    $region31: #{tpu_custom_call.1} parent=1 // pred_check_branch
      %69 = sbr.rel (0) target = $region33
    $region32: #{tpu_custom_call.1} parent=1 // pred_region
      %70 = dma.done [#allocation9], 1024
    $region33: #{tpu_custom_call.1} parent=1 // pred_fallthru
      _
    %v72 = vld [vmem:[#allocation2] sm:$0xff]
    %v73 = vld [vmem:[#allocation2 + $0x8] sm:$0xff]
    %v74 = vld [vmem:[#allocation2 + $0x10] sm:$0xff]
    %v75 = vld [vmem:[#allocation2 + $0x18] sm:$0xff]
    %v76 = vld [vmem:[#allocation2 + $0x20] sm:$0xff]
    %v77 = vld [vmem:[#allocation2 + $0x28] sm:$0xff]
    %v78 = vld [vmem:[#allocation2 + $0x30] sm:$0xff]
    %v79 = vld [vmem:[#allocation2 + $0x38] sm:$0xff]
    %v80 = vld [vmem:[#allocation5] sm:$0xf]
    %v81 = vld [vmem:[#allocation5 + $0x4] sm:$0xf]
    %v82 = vld [vmem:[#allocation5 + $0x8] sm:$0xf]
    %v83 = vld [vmem:[#allocation5 + $0xc] sm:$0xf]
    %v84 = vld [vmem:[#allocation5 + $0x10] sm:$0xf]
    %v85 = vld [vmem:[#allocation5 + $0x14] sm:$0xf]
    %v86 = vld [vmem:[#allocation5 + $0x18] sm:$0xf]
    %v87 = vld [vmem:[#allocation5 + $0x1c] sm:$0xf]
    %v88 = vld [vmem:[#allocation5 + $0x20] sm:$0xf]
    %v89 = vld [vmem:[#allocation5 + $0x24] sm:$0xf]
    %v90 = vld [vmem:[#allocation5 + $0x28] sm:$0xf]
    %v91 = vld [vmem:[#allocation5 + $0x2c] sm:$0xf]
    %v92 = vld [vmem:[#allocation5 + $0x30] sm:$0xf]
    %v93 = vld [vmem:[#allocation5 + $0x34] sm:$0xf]
    %v94 = vld [vmem:[#allocation5 + $0x38] sm:$0xf]
    %v95 = vld [vmem:[#allocation5 + $0x3c] sm:$0xf]
    %v96 = vld [vmem:[#allocation5 + $0x40] sm:$0xf]
    %v97 = vld [vmem:[#allocation5 + $0x44] sm:$0xf]
    %v98 = vld [vmem:[#allocation5 + $0x48] sm:$0xf]
    %v99 = vld [vmem:[#allocation5 + $0x4c] sm:$0xf]
    %v100 = vld [vmem:[#allocation5 + $0x50] sm:$0xf]
    %v101 = vld [vmem:[#allocation5 + $0x54] sm:$0xf]
    %v102 = vld [vmem:[#allocation5 + $0x58] sm:$0xf]
    %v103 = vld [vmem:[#allocation5 + $0x5c] sm:$0xf]
    %v104 = vld [vmem:[#allocation5 + $0x60] sm:$0xf]
    %v105 = vld [vmem:[#allocation5 + $0x64] sm:$0xf]
    %v106 = vld [vmem:[#allocation5 + $0x68] sm:$0xf]
    %v107 = vld [vmem:[#allocation5 + $0x6c] sm:$0xf]
    %v108 = vld [vmem:[#allocation5 + $0x70] sm:$0xf]
    %v109 = vld [vmem:[#allocation5 + $0x74] sm:$0xf]
    %v110 = vld [vmem:[#allocation5 + $0x78] sm:$0xf]
    %v111 = vld [vmem:[#allocation5 + $0x7c] sm:$0xf]
    %v112 = vld [vmem:[#allocation5 + $0x80] sm:$0xf]
    %v113 = vld [vmem:[#allocation5 + $0x84] sm:$0xf]
    %v114 = vld [vmem:[#allocation5 + $0x88] sm:$0xf]
    %v115 = vld [vmem:[#allocation5 + $0x8c] sm:$0xf]
    %v116 = vld [vmem:[#allocation5 + $0x90] sm:$0xf]
    %v117 = vld [vmem:[#allocation5 + $0x94] sm:$0xf]
    %v118 = vld [vmem:[#allocation5 + $0x98] sm:$0xf]
    %v119 = vld [vmem:[#allocation5 + $0x9c] sm:$0xf]
    %v120 = vld [vmem:[#allocation5 + $0xa0] sm:$0xf]
    %v121 = vld [vmem:[#allocation5 + $0xa4] sm:$0xf]
    %v122 = vld [vmem:[#allocation5 + $0xa8] sm:$0xf]
    %v123 = vld [vmem:[#allocation5 + $0xac] sm:$0xf]
    %v124 = vld [vmem:[#allocation5 + $0xb0] sm:$0xf]
    %v125 = vld [vmem:[#allocation5 + $0xb4] sm:$0xf]
    %v126 = vld [vmem:[#allocation5 + $0xb8] sm:$0xf]
    %v127 = vld [vmem:[#allocation5 + $0xbc] sm:$0xf]
    %v128 = vld [vmem:[#allocation5 + $0xc0] sm:$0xf]
    %v129 = vld [vmem:[#allocation5 + $0xc4] sm:$0xf]
    %v130 = vld [vmem:[#allocation5 + $0xc8] sm:$0xf]
    %v131 = vld [vmem:[#allocation5 + $0xcc] sm:$0xf]
    %v132 = vld [vmem:[#allocation5 + $0xd0] sm:$0xf]
    %v133 = vld [vmem:[#allocation5 + $0xd4] sm:$0xf]
    %v134 = vld [vmem:[#allocation5 + $0xd8] sm:$0xf]
    %v135 = vld [vmem:[#allocation5 + $0xdc] sm:$0xf]
    %v136 = vld [vmem:[#allocation5 + $0xe0] sm:$0xf]
    %v137 = vld [vmem:[#allocation5 + $0xe4] sm:$0xf]
    %v138 = vld [vmem:[#allocation5 + $0xe8] sm:$0xf]
    %v139 = vld [vmem:[#allocation5 + $0xec] sm:$0xf]
    %v140 = vld [vmem:[#allocation5 + $0xf0] sm:$0xf]
    %v141 = vld [vmem:[#allocation5 + $0xf4] sm:$0xf]
    %v142 = vld [vmem:[#allocation5 + $0xf8] sm:$0xf]
    %v143 = vld [vmem:[#allocation5 + $0xfc] sm:$0xf]
    %v144 = vld [vmem:[#allocation5 + $0x100] sm:$0xf]
    %v145 = vld [vmem:[#allocation5 + $0x104] sm:$0xf]
    %v146 = vld [vmem:[#allocation5 + $0x108] sm:$0xf]
    %v147 = vld [vmem:[#allocation5 + $0x10c] sm:$0xf]
    %v148 = vld [vmem:[#allocation5 + $0x110] sm:$0xf]
    %v149 = vld [vmem:[#allocation5 + $0x114] sm:$0xf]
    %v150 = vld [vmem:[#allocation5 + $0x118] sm:$0xf]
    %v151 = vld [vmem:[#allocation5 + $0x11c] sm:$0xf]
    %v152 = vld [vmem:[#allocation5 + $0x120] sm:$0xf]
    %v153 = vld [vmem:[#allocation5 + $0x124] sm:$0xf]
    %v154 = vld [vmem:[#allocation5 + $0x128] sm:$0xf]
    %v155 = vld [vmem:[#allocation5 + $0x12c] sm:$0xf]
    %v156 = vld [vmem:[#allocation5 + $0x130] sm:$0xf]
    %v157 = vld [vmem:[#allocation5 + $0x134] sm:$0xf]
    %v158 = vld [vmem:[#allocation5 + $0x138] sm:$0xf]
    %v159 = vld [vmem:[#allocation5 + $0x13c] sm:$0xf]
    %v160 = vld [vmem:[#allocation5 + $0x140] sm:$0xf]
    %v161 = vld [vmem:[#allocation5 + $0x144] sm:$0xf]
    %v162 = vld [vmem:[#allocation5 + $0x148] sm:$0xf]
    %v163 = vld [vmem:[#allocation5 + $0x14c] sm:$0xf]
    %v164 = vld [vmem:[#allocation5 + $0x150] sm:$0xf]
    %v165 = vld [vmem:[#allocation5 + $0x154] sm:$0xf]
    %v166 = vld [vmem:[#allocation5 + $0x158] sm:$0xf]
    %v167 = vld [vmem:[#allocation5 + $0x15c] sm:$0xf]
    %v168 = vld [vmem:[#allocation5 + $0x160] sm:$0xf]
    %v169 = vld [vmem:[#allocation5 + $0x164] sm:$0xf]
    %v170 = vld [vmem:[#allocation5 + $0x168] sm:$0xf]
    %v171 = vld [vmem:[#allocation5 + $0x16c] sm:$0xf]
    %v172 = vld [vmem:[#allocation5 + $0x170] sm:$0xf]
    %v173 = vld [vmem:[#allocation5 + $0x174] sm:$0xf]
    %v174 = vld [vmem:[#allocation5 + $0x178] sm:$0xf]
    %v175 = vld [vmem:[#allocation5 + $0x17c] sm:$0xf]
    %v176 = vld [vmem:[#allocation5 + $0x180] sm:$0xf]
    %v177 = vld [vmem:[#allocation5 + $0x184] sm:$0xf]
    %v178 = vld [vmem:[#allocation5 + $0x188] sm:$0xf]
    %v179 = vld [vmem:[#allocation5 + $0x18c] sm:$0xf]
    %v180 = vld [vmem:[#allocation5 + $0x190] sm:$0xf]
    %v181 = vld [vmem:[#allocation5 + $0x194] sm:$0xf]
    %v182 = vld [vmem:[#allocation5 + $0x198] sm:$0xf]
    %v183 = vld [vmem:[#allocation5 + $0x19c] sm:$0xf]
    %v184 = vld [vmem:[#allocation5 + $0x1a0] sm:$0xf]
    %v185 = vld [vmem:[#allocation5 + $0x1a4] sm:$0xf]
    %v186 = vld [vmem:[#allocation5 + $0x1a8] sm:$0xf]
    %v187 = vld [vmem:[#allocation5 + $0x1ac] sm:$0xf]
    %v188 = vld [vmem:[#allocation5 + $0x1b0] sm:$0xf]
    %v189 = vld [vmem:[#allocation5 + $0x1b4] sm:$0xf]
    %v190 = vld [vmem:[#allocation5 + $0x1b8] sm:$0xf]
    %v191 = vld [vmem:[#allocation5 + $0x1bc] sm:$0xf]
    %v192 = vld [vmem:[#allocation5 + $0x1c0] sm:$0xf]
    %v193 = vld [vmem:[#allocation5 + $0x1c4] sm:$0xf]
    %v194 = vld [vmem:[#allocation5 + $0x1c8] sm:$0xf]
    %v195 = vld [vmem:[#allocation5 + $0x1cc] sm:$0xf]
    %v196 = vld [vmem:[#allocation5 + $0x1d0] sm:$0xf]
    %v197 = vld [vmem:[#allocation5 + $0x1d4] sm:$0xf]
    %v198 = vld [vmem:[#allocation5 + $0x1d8] sm:$0xf]
    %v199 = vld [vmem:[#allocation5 + $0x1dc] sm:$0xf]
    %v200 = vld [vmem:[#allocation5 + $0x1e0] sm:$0xf]
    %v201 = vld [vmem:[#allocation5 + $0x1e4] sm:$0xf]
    %v202 = vld [vmem:[#allocation5 + $0x1e8] sm:$0xf]
    %v203 = vld [vmem:[#allocation5 + $0x1ec] sm:$0xf]
    %v204 = vld [vmem:[#allocation5 + $0x1f0] sm:$0xf]
    %v205 = vld [vmem:[#allocation5 + $0x1f4] sm:$0xf]
    %v206 = vld [vmem:[#allocation5 + $0x1f8] sm:$0xf]
    %v207 = vld [vmem:[#allocation5 + $0x1fc] sm:$0xf]
    %v208 = vld [vmem:[#allocation7] sm:$0x1]
    %v209 = vlaneseq
    %v210 = vshrl.u32 %v209, 7
    %v211 = vsub.s32 0, %v210
    %v212 = vrot.slane %v208, %v211
    %v221 = vunpack.c.l.b16 %v72
    %v222 = vunpack.c.h.b16 %v72
    %v223 = vunpack.c.l.b16 %v73
    %v224 = vunpack.c.h.b16 %v73
    %v225 = vunpack.c.l.b16 %v74
    %v226 = vunpack.c.h.b16 %v74
    %v227 = vunpack.c.l.b16 %v75
    %v228 = vunpack.c.h.b16 %v75
    %v229 = vunpack.c.l.b16 %v76
    %v230 = vunpack.c.h.b16 %v76
    %v231 = vunpack.c.l.b16 %v77
    %v232 = vunpack.c.h.b16 %v77
    %v233 = vunpack.c.l.b16 %v78
    %v234 = vunpack.c.h.b16 %v78
    %v235 = vunpack.c.l.b16 %v79
    %v236 = vunpack.c.h.b16 %v79
    %v237 = vpack.c.b16 %v229, %v221
    %v238 = vpack.c.b16 %v230, %v222
    %v239 = vpack.c.b16 %v231, %v223
    %v240 = vpack.c.b16 %v232, %v224
    %v241 = vpack.c.b16 %v233, %v225
    %v242 = vpack.c.b16 %v234, %v226
    %v243 = vpack.c.b16 %v235, %v227
    %v244 = vpack.c.b16 %v236, %v228
    %v381 = vunpack.c.l.b16 %v80
    %v382 = vunpack.c.l.b16 %v81
    %v383 = vunpack.c.l.b16 %v82
    %v384 = vunpack.c.l.b16 %v83
    %v385 = vunpack.c.l.b16 %v84
    %v386 = vunpack.c.l.b16 %v85
    %v387 = vunpack.c.l.b16 %v86
    %v388 = vunpack.c.l.b16 %v87
    %v389 = vunpack.c.l.b16 %v88
    %v390 = vunpack.c.l.b16 %v89
    %v391 = vunpack.c.l.b16 %v90
    %v392 = vunpack.c.l.b16 %v91
    %v393 = vunpack.c.l.b16 %v92
    %v394 = vunpack.c.l.b16 %v93
    %v395 = vunpack.c.l.b16 %v94
    %v396 = vunpack.c.l.b16 %v95
    %v397 = vunpack.c.l.b16 %v96
    %v398 = vunpack.c.l.b16 %v97
    %v399 = vunpack.c.l.b16 %v98
    %v400 = vunpack.c.l.b16 %v99
    %v401 = vunpack.c.l.b16 %v100
    %v402 = vunpack.c.l.b16 %v101
    %v403 = vunpack.c.l.b16 %v102
    %v404 = vunpack.c.l.b16 %v103
    %v405 = vunpack.c.l.b16 %v104
    %v406 = vunpack.c.l.b16 %v105
    %v407 = vunpack.c.l.b16 %v106
    %v408 = vunpack.c.l.b16 %v107
    %v409 = vunpack.c.l.b16 %v108
    %v410 = vunpack.c.l.b16 %v109
    %v411 = vunpack.c.l.b16 %v110
    %v412 = vunpack.c.l.b16 %v111
    %v413 = vunpack.c.l.b16 %v112
    %v414 = vunpack.c.l.b16 %v113
    %v415 = vunpack.c.l.b16 %v114
    %v416 = vunpack.c.l.b16 %v115
    %v417 = vunpack.c.l.b16 %v116
    %v418 = vunpack.c.l.b16 %v117
    %v419 = vunpack.c.l.b16 %v118
    %v420 = vunpack.c.l.b16 %v119
    %v421 = vunpack.c.l.b16 %v120
    %v422 = vunpack.c.l.b16 %v121
    %v423 = vunpack.c.l.b16 %v122
    %v424 = vunpack.c.l.b16 %v123
    %v425 = vunpack.c.l.b16 %v124
    %v426 = vunpack.c.l.b16 %v125
    %v427 = vunpack.c.l.b16 %v126
    %v428 = vunpack.c.l.b16 %v127
    %v429 = vunpack.c.l.b16 %v128
    %v430 = vunpack.c.l.b16 %v129
    %v431 = vunpack.c.l.b16 %v130
    %v432 = vunpack.c.l.b16 %v131
    %v433 = vunpack.c.l.b16 %v132
    %v434 = vunpack.c.l.b16 %v133
    %v435 = vunpack.c.l.b16 %v134
    %v436 = vunpack.c.l.b16 %v135
    %v437 = vunpack.c.l.b16 %v136
    %v438 = vunpack.c.l.b16 %v137
    %v439 = vunpack.c.l.b16 %v138
    %v440 = vunpack.c.l.b16 %v139
    %v441 = vunpack.c.l.b16 %v140
    %v442 = vunpack.c.l.b16 %v141
    %v443 = vunpack.c.l.b16 %v142
    %v444 = vunpack.c.l.b16 %v143
    %v445 = vunpack.c.l.b16 %v144
    %v446 = vunpack.c.l.b16 %v145
    %v447 = vunpack.c.l.b16 %v146
    %v448 = vunpack.c.l.b16 %v147
    %v449 = vunpack.c.l.b16 %v148
    %v450 = vunpack.c.l.b16 %v149
    %v451 = vunpack.c.l.b16 %v150
    %v452 = vunpack.c.l.b16 %v151
    %v453 = vunpack.c.l.b16 %v152
    %v454 = vunpack.c.l.b16 %v153
    %v455 = vunpack.c.l.b16 %v154
    %v456 = vunpack.c.l.b16 %v155
    %v457 = vunpack.c.l.b16 %v156
    %v458 = vunpack.c.l.b16 %v157
    %v459 = vunpack.c.l.b16 %v158
    %v460 = vunpack.c.l.b16 %v159
    %v461 = vunpack.c.l.b16 %v160
    %v462 = vunpack.c.l.b16 %v161
    %v463 = vunpack.c.l.b16 %v162
    %v464 = vunpack.c.l.b16 %v163
    %v465 = vunpack.c.l.b16 %v164
    %v466 = vunpack.c.l.b16 %v165
    %v467 = vunpack.c.l.b16 %v166
    %v468 = vunpack.c.l.b16 %v167
    %v469 = vunpack.c.l.b16 %v168
    %v470 = vunpack.c.l.b16 %v169
    %v471 = vunpack.c.l.b16 %v170
    %v472 = vunpack.c.l.b16 %v171
    %v473 = vunpack.c.l.b16 %v172
    %v474 = vunpack.c.l.b16 %v173
    %v475 = vunpack.c.l.b16 %v174
    %v476 = vunpack.c.l.b16 %v175
    %v477 = vunpack.c.l.b16 %v176
    %v478 = vunpack.c.l.b16 %v177
    %v479 = vunpack.c.l.b16 %v178
    %v480 = vunpack.c.l.b16 %v179
    %v481 = vunpack.c.l.b16 %v180
    %v482 = vunpack.c.l.b16 %v181
    %v483 = vunpack.c.l.b16 %v182
    %v484 = vunpack.c.l.b16 %v183
    %v485 = vunpack.c.l.b16 %v184
    %v486 = vunpack.c.l.b16 %v185
    %v487 = vunpack.c.l.b16 %v186
    %v488 = vunpack.c.l.b16 %v187
    %v489 = vunpack.c.l.b16 %v188
    %v490 = vunpack.c.l.b16 %v189
    %v491 = vunpack.c.l.b16 %v190
    %v492 = vunpack.c.l.b16 %v191
    %v493 = vunpack.c.l.b16 %v192
    %v494 = vunpack.c.l.b16 %v193
    %v495 = vunpack.c.l.b16 %v194
    %v496 = vunpack.c.l.b16 %v195
    %v497 = vunpack.c.l.b16 %v196
    %v498 = vunpack.c.l.b16 %v197
    %v499 = vunpack.c.l.b16 %v198
    %v500 = vunpack.c.l.b16 %v199
    %v501 = vunpack.c.l.b16 %v200
    %v502 = vunpack.c.l.b16 %v201
    %v503 = vunpack.c.l.b16 %v202
    %v504 = vunpack.c.l.b16 %v203
    %v505 = vunpack.c.l.b16 %v204
    %v506 = vunpack.c.l.b16 %v205
    %v507 = vunpack.c.l.b16 %v206
    %v508 = vunpack.c.l.b16 %v207
    %v509 = vpack.c.b16 %v382, %v381
    %v510 = vpack.c.b16 %v384, %v383
    %v511 = vpack.c.b16 %v386, %v385
    %v512 = vpack.c.b16 %v388, %v387
    %v513 = vpack.c.b16 %v390, %v389
    %v514 = vpack.c.b16 %v392, %v391
    %v515 = vpack.c.b16 %v394, %v393
    %v516 = vpack.c.b16 %v396, %v395
    %v517 = vpack.c.b16 %v398, %v397
    %v518 = vpack.c.b16 %v400, %v399
    %v519 = vpack.c.b16 %v402, %v401
    %v520 = vpack.c.b16 %v404, %v403
    %v521 = vpack.c.b16 %v406, %v405
    %v522 = vpack.c.b16 %v408, %v407
    %v523 = vpack.c.b16 %v410, %v409
    %v524 = vpack.c.b16 %v412, %v411
    %v525 = vpack.c.b16 %v414, %v413
    %v526 = vpack.c.b16 %v416, %v415
    %v527 = vpack.c.b16 %v418, %v417
    %v528 = vpack.c.b16 %v420, %v419
    %v529 = vpack.c.b16 %v422, %v421
    %v530 = vpack.c.b16 %v424, %v423
    %v531 = vpack.c.b16 %v426, %v425
    %v532 = vpack.c.b16 %v428, %v427
    %v533 = vpack.c.b16 %v430, %v429
    %v534 = vpack.c.b16 %v432, %v431
    %v535 = vpack.c.b16 %v434, %v433
    %v536 = vpack.c.b16 %v436, %v435
    %v537 = vpack.c.b16 %v438, %v437
    %v538 = vpack.c.b16 %v440, %v439
    %v539 = vpack.c.b16 %v442, %v441
    %v540 = vpack.c.b16 %v444, %v443
    %v541 = vpack.c.b16 %v446, %v445
    %v542 = vpack.c.b16 %v448, %v447
    %v543 = vpack.c.b16 %v450, %v449
    %v544 = vpack.c.b16 %v452, %v451
    %v545 = vpack.c.b16 %v454, %v453
    %v546 = vpack.c.b16 %v456, %v455
    %v547 = vpack.c.b16 %v458, %v457
    %v548 = vpack.c.b16 %v460, %v459
    %v549 = vpack.c.b16 %v462, %v461
    %v550 = vpack.c.b16 %v464, %v463
    %v551 = vpack.c.b16 %v466, %v465
    %v552 = vpack.c.b16 %v468, %v467
    %v553 = vpack.c.b16 %v470, %v469
    %v554 = vpack.c.b16 %v472, %v471
    %v555 = vpack.c.b16 %v474, %v473
    %v556 = vpack.c.b16 %v476, %v475
    %v557 = vpack.c.b16 %v478, %v477
    %v558 = vpack.c.b16 %v480, %v479
    %v559 = vpack.c.b16 %v482, %v481
    %v560 = vpack.c.b16 %v484, %v483
    %v561 = vpack.c.b16 %v486, %v485
    %v562 = vpack.c.b16 %v488, %v487
    %v563 = vpack.c.b16 %v490, %v489
    %v564 = vpack.c.b16 %v492, %v491
    %v565 = vpack.c.b16 %v494, %v493
    %v566 = vpack.c.b16 %v496, %v495
    %v567 = vpack.c.b16 %v498, %v497
    %v568 = vpack.c.b16 %v500, %v499
    %v569 = vpack.c.b16 %v502, %v501
    %v570 = vpack.c.b16 %v504, %v503
    %v571 = vpack.c.b16 %v506, %v505
    %v572 = vpack.c.b16 %v508, %v507
    %637 = vmatprep.subr.bf16.mxu0 0
    %638 = vmatpush1.bf16.msra.mxu0 %v509
    %639 = vmatprep.subr.bf16.mxu0 0
    %640 = vmatpush1.bf16.msra.mxu0 %v510
    %641 = vmatprep.subr.bf16.mxu0 0
    %642 = vmatpush1.bf16.msra.mxu0 %v511
    %643 = vmatprep.subr.bf16.mxu0 0
    %644 = vmatpush1.bf16.msra.mxu0 %v512
    %645 = vmatprep.subr.bf16.mxu0 0
    %646 = vmatpush1.bf16.msra.mxu0 %v513
    %647 = vmatprep.subr.bf16.mxu0 0
    %648 = vmatpush1.bf16.msra.mxu0 %v514
    %649 = vmatprep.subr.bf16.mxu0 0
    %650 = vmatpush1.bf16.msra.mxu0 %v515
    %651 = vmatprep.subr.bf16.mxu0 0
    %652 = vmatpush1.bf16.msra.mxu0 %v516
    %653 = vmatprep.subr.bf16.mxu0 0
    %654 = vmatpush1.bf16.msra.mxu0 %v517
    %655 = vmatprep.subr.bf16.mxu0 0
    %656 = vmatpush1.bf16.msra.mxu0 %v518
    %657 = vmatprep.subr.bf16.mxu0 0
    %658 = vmatpush1.bf16.msra.mxu0 %v519
    %659 = vmatprep.subr.bf16.mxu0 0
    %660 = vmatpush1.bf16.msra.mxu0 %v520
    %661 = vmatprep.subr.bf16.mxu0 0
    %662 = vmatpush1.bf16.msra.mxu0 %v521
    %663 = vmatprep.subr.bf16.mxu0 0
    %664 = vmatpush1.bf16.msra.mxu0 %v522
    %665 = vmatprep.subr.bf16.mxu0 0
    %666 = vmatpush1.bf16.msra.mxu0 %v523
    %667 = vmatprep.subr.bf16.mxu0 0
    %668 = vmatpush1.bf16.msra.mxu0 %v524
    %669 = vmatprep.mubr.bf16.mxu0 %v238
    %670 = vmatmul.mubr.bf16.gmra.mrb[0].mxu0 %v237
    %v671 = vpop.f32.mrb[0].mxu0
    %v672 = vadd.f32 %v212, %v671
    %v673 = vpop.f32.mrb[0].mxu0
    %v674 = vpop.f32.mrb[0].mxu0
    %v675 = vadd.f32 %v212, %v674
    %v676 = vpop.f32.mrb[0].mxu0
    %677 = vdwg.mxu0
    %678 = vmatprep.subr.bf16.mxu0 0
    %679 = vmatpush1.bf16.msra.mxu0 %v525
    %680 = vmatprep.subr.bf16.mxu0 0
    %681 = vmatpush1.bf16.msra.mxu0 %v526
    %682 = vmatprep.subr.bf16.mxu0 0
    %683 = vmatpush1.bf16.msra.mxu0 %v527
    %684 = vmatprep.subr.bf16.mxu0 0
    %685 = vmatpush1.bf16.msra.mxu0 %v528
    %686 = vmatprep.subr.bf16.mxu0 0
    %687 = vmatpush1.bf16.msra.mxu0 %v529
    %688 = vmatprep.subr.bf16.mxu0 0
    %689 = vmatpush1.bf16.msra.mxu0 %v530
    %690 = vmatprep.subr.bf16.mxu0 0
    %691 = vmatpush1.bf16.msra.mxu0 %v531
    %692 = vmatprep.subr.bf16.mxu0 0
    %693 = vmatpush1.bf16.msra.mxu0 %v532
    %694 = vmatprep.subr.bf16.mxu0 0
    %695 = vmatpush1.bf16.msra.mxu0 %v533
    %696 = vmatprep.subr.bf16.mxu0 0
    %697 = vmatpush1.bf16.msra.mxu0 %v534
    %698 = vmatprep.subr.bf16.mxu0 0
    %699 = vmatpush1.bf16.msra.mxu0 %v535
    %700 = vmatprep.subr.bf16.mxu0 0
    %701 = vmatpush1.bf16.msra.mxu0 %v536
    %702 = vmatprep.subr.bf16.mxu0 0
    %703 = vmatpush1.bf16.msra.mxu0 %v537
    %704 = vmatprep.subr.bf16.mxu0 0
    %705 = vmatpush1.bf16.msra.mxu0 %v538
    %706 = vmatprep.subr.bf16.mxu0 0
    %707 = vmatpush1.bf16.msra.mxu0 %v539
    %708 = vmatprep.subr.bf16.mxu0 0
    %709 = vmatpush1.bf16.msra.mxu0 %v540
    %710 = vmatprep.mubr.bf16.mxu0 %v240
    %711 = vmatmul.mubr.bf16.gmra.mrb[0].mxu0 %v239
    %v712 = vpop.f32.mrb[0].mxu0
    %v713 = vadd.f32 %v672, %v712
    %v714 = vpop.f32.mrb[0].mxu0
    %v715 = vpop.f32.mrb[0].mxu0
    %v716 = vadd.f32 %v675, %v715
    %v717 = vpop.f32.mrb[0].mxu0
    %718 = vdwg.mxu0
    %719 = vmatprep.subr.bf16.mxu0 0
    %720 = vmatpush1.bf16.msra.mxu0 %v541
    %721 = vmatprep.subr.bf16.mxu0 0
    %722 = vmatpush1.bf16.msra.mxu0 %v542
    %723 = vmatprep.subr.bf16.mxu0 0
    %724 = vmatpush1.bf16.msra.mxu0 %v543
    %725 = vmatprep.subr.bf16.mxu0 0
    %726 = vmatpush1.bf16.msra.mxu0 %v544
    %727 = vmatprep.subr.bf16.mxu0 0
    %728 = vmatpush1.bf16.msra.mxu0 %v545
    %729 = vmatprep.subr.bf16.mxu0 0
    %730 = vmatpush1.bf16.msra.mxu0 %v546
    %731 = vmatprep.subr.bf16.mxu0 0
    %732 = vmatpush1.bf16.msra.mxu0 %v547
    %733 = vmatprep.subr.bf16.mxu0 0
    %734 = vmatpush1.bf16.msra.mxu0 %v548
    %735 = vmatprep.subr.bf16.mxu0 0
    %736 = vmatpush1.bf16.msra.mxu0 %v549
    %737 = vmatprep.subr.bf16.mxu0 0
    %738 = vmatpush1.bf16.msra.mxu0 %v550
    %739 = vmatprep.subr.bf16.mxu0 0
    %740 = vmatpush1.bf16.msra.mxu0 %v551
    %741 = vmatprep.subr.bf16.mxu0 0
    %742 = vmatpush1.bf16.msra.mxu0 %v552
    %743 = vmatprep.subr.bf16.mxu0 0
    %744 = vmatpush1.bf16.msra.mxu0 %v553
    %745 = vmatprep.subr.bf16.mxu0 0
    %746 = vmatpush1.bf16.msra.mxu0 %v554
    %747 = vmatprep.subr.bf16.mxu0 0
    %748 = vmatpush1.bf16.msra.mxu0 %v555
    %749 = vmatprep.subr.bf16.mxu0 0
    %750 = vmatpush1.bf16.msra.mxu0 %v556
    %751 = vmatprep.mubr.bf16.mxu0 %v242
    %752 = vmatmul.mubr.bf16.gmra.mrb[0].mxu0 %v241
    %v753 = vpop.f32.mrb[0].mxu0
    %v754 = vadd.f32 %v713, %v753
    %v755 = vpop.f32.mrb[0].mxu0
    %v756 = vpop.f32.mrb[0].mxu0
    %v757 = vadd.f32 %v716, %v756
    %v758 = vpop.f32.mrb[0].mxu0
    %759 = vdwg.mxu0
    %760 = vmatprep.subr.bf16.mxu0 0
    %761 = vmatpush1.bf16.msra.mxu0 %v557
    %762 = vmatprep.subr.bf16.mxu0 0
    %763 = vmatpush1.bf16.msra.mxu0 %v558
    %764 = vmatprep.subr.bf16.mxu0 0
    %765 = vmatpush1.bf16.msra.mxu0 %v559
    %766 = vmatprep.subr.bf16.mxu0 0
    %767 = vmatpush1.bf16.msra.mxu0 %v560
    %768 = vmatprep.subr.bf16.mxu0 0
    %769 = vmatpush1.bf16.msra.mxu0 %v561
    %770 = vmatprep.subr.bf16.mxu0 0
    %771 = vmatpush1.bf16.msra.mxu0 %v562
    %772 = vmatprep.subr.bf16.mxu0 0
    %773 = vmatpush1.bf16.msra.mxu0 %v563
    %774 = vmatprep.subr.bf16.mxu0 0
    %775 = vmatpush1.bf16.msra.mxu0 %v564
    %776 = vmatprep.subr.bf16.mxu0 0
    %777 = vmatpush1.bf16.msra.mxu0 %v565
    %778 = vmatprep.subr.bf16.mxu0 0
    %779 = vmatpush1.bf16.msra.mxu0 %v566
    %780 = vmatprep.subr.bf16.mxu0 0
    %781 = vmatpush1.bf16.msra.mxu0 %v567
    %782 = vmatprep.subr.bf16.mxu0 0
    %783 = vmatpush1.bf16.msra.mxu0 %v568
    %784 = vmatprep.subr.bf16.mxu0 0
    %785 = vmatpush1.bf16.msra.mxu0 %v569
    %786 = vmatprep.subr.bf16.mxu0 0
    %787 = vmatpush1.bf16.msra.mxu0 %v570
    %788 = vmatprep.subr.bf16.mxu0 0
    %789 = vmatpush1.bf16.msra.mxu0 %v571
    %790 = vmatprep.subr.bf16.mxu0 0
    %791 = vmatpush1.bf16.msra.mxu0 %v572
    %792 = vmatprep.mubr.bf16.mxu0 %v244
    %793 = vmatmul.mubr.bf16.gmra.mrb[0].mxu0 %v243
    %v794 = vpop.f32.mrb[0].mxu0
    %v795 = vadd.f32 %v754, %v794
    %v796 = vpop.f32.mrb[0].mxu0
    %v797 = vpop.f32.mrb[0].mxu0
    %v798 = vadd.f32 %v757, %v797
    %v799 = vpop.f32.mrb[0].mxu0
    %800 = vdwg.mxu0
    %v801 = vlaneseq
    %v802 = vshrl.u32 %v801, 7
    %v803 = vadd.s32 %v802, 8
    %vm804 = vcmp.lt.s32.totalorder %v802, 8
    %vm805 = vcmp.lt.s32.totalorder %v803, 8
    %v806 = vsel %vm804, 1, 0
    %v807 = vsel %vm805, 1, 0
    %vm808 = vcmp.eq.s32.totalorder %v806, 1
    %vm809 = vcmp.eq.s32.totalorder %v807, 1
    %v810 = vsel %vm808, %v795, 0.0
    %v811 = vsel %vm809, %v798, 0.0
    %v812 = vadd.f32 %v810, %v811
    %v813 = vrot.slane %v812, 4
    %v814 = vadd.f32 %v812, %v813
    %v815 = vrot.slane %v814, 2
    %v816 = vadd.f32 %v814, %v815
    %v817 = vrot.slane %v816, 1
    %v818 = vadd.f32 %v816, %v817
    %v819 = vmul.f32 %v810, %v795
    %v820 = vmul.f32 %v811, %v798
    %v821 = vadd.f32 %v819, %v820
    %v822 = vrot.slane %v821, 4
    %v823 = vadd.f32 %v821, %v822
    %v824 = vrot.slane %v823, 2
    %v825 = vadd.f32 %v823, %v824
    %v826 = vrot.slane %v825, 1
    %v827 = vadd.f32 %v825, %v826
    %v828 = vmul.f32 %v818, 0.125
    %v829 = vmul.f32 %v827, 0.125
    %v830 = vmul.f32 %v828, %v828
    %v831 = vsub.f32 %v829, %v830
    %v832 = vmax.f32 %v831, 0.0
    %v833 = vsub.f32 %v795, %v828
    %v834 = vsub.f32 %v798, %v828
    %v835 = vadd.f32 %v832, 1e-05
    %v836 = vrsqrt.pop %v835
    %v837 = vmul.f32 %v833, %v836
    %v838 = vmul.f32 %v834, %v836
    %v839 = vld [vmem:[#allocation7 + $0x1] sm:$0x1]
    %v840 = vlaneseq
    %v841 = vshrl.u32 %v840, 7
    %v842 = vsub.s32 0, %v841
    %v843 = vrot.slane %v839, %v842
    %v844 = vmul.f32 %v837, %v843
    %v845 = vmul.f32 %v838, %v843
    %v846 = vld [vmem:[#allocation7 + $0x2] sm:$0x1]
    %v847 = vlaneseq
    %v848 = vshrl.u32 %v847, 7
    %v849 = vsub.s32 0, %v848
    %v850 = vrot.slane %v846, %v849
    %v851 = vadd.f32 %v844, %v850
    %v852 = vadd.f32 %v845, %v850
    %vm853 = vcmp.ge.f32.partialorder %v851, 0.0
    %vm854 = vcmp.ge.f32.partialorder %v852, 0.0
    %v855 = vmul.f32 %v851, 0.1
    %v856 = vmul.f32 %v852, 0.1
    %v857 = vsel %vm853, %v851, %v855
    %v858 = vsel %vm854, %v852, %v856
    %v859 = vpack.c.bf16 %v858, %v857
    %v860 = vld [vmem:[#allocation8] sm:$0xf]
    %v861 = vld [vmem:[#allocation8 + $0x4] sm:$0xf]
    %v862 = vld [vmem:[#allocation8 + $0x8] sm:$0xf]
    %v863 = vld [vmem:[#allocation8 + $0xc] sm:$0xf]
    %v864 = vld [vmem:[#allocation8 + $0x10] sm:$0xf]
    %v865 = vld [vmem:[#allocation8 + $0x14] sm:$0xf]
    %v866 = vld [vmem:[#allocation8 + $0x18] sm:$0xf]
    %v867 = vld [vmem:[#allocation8 + $0x1c] sm:$0xf]
    %v868 = vld [vmem:[#allocation8 + $0x20] sm:$0xf]
    %v869 = vld [vmem:[#allocation8 + $0x24] sm:$0xf]
    %v870 = vld [vmem:[#allocation8 + $0x28] sm:$0xf]
    %v871 = vld [vmem:[#allocation8 + $0x2c] sm:$0xf]
    %v872 = vld [vmem:[#allocation8 + $0x30] sm:$0xf]
    %v873 = vld [vmem:[#allocation8 + $0x34] sm:$0xf]
    %v874 = vld [vmem:[#allocation8 + $0x38] sm:$0xf]
    %v875 = vld [vmem:[#allocation8 + $0x3c] sm:$0xf]
    %v876 = vld [vmem:[#allocation7 + $0x3] sm:$0x1]
    %v877 = vlaneseq
    %v878 = vshrl.u32 %v877, 7
    %v879 = vsub.s32 0, %v878
    %v880 = vrot.slane %v876, %v879
    %v897 = vunpack.c.l.b16 %v860
    %v898 = vunpack.c.l.b16 %v861
    %v899 = vunpack.c.l.b16 %v862
    %v900 = vunpack.c.l.b16 %v863
    %v901 = vunpack.c.l.b16 %v864
    %v902 = vunpack.c.l.b16 %v865
    %v903 = vunpack.c.l.b16 %v866
    %v904 = vunpack.c.l.b16 %v867
    %v905 = vunpack.c.l.b16 %v868
    %v906 = vunpack.c.l.b16 %v869
    %v907 = vunpack.c.l.b16 %v870
    %v908 = vunpack.c.l.b16 %v871
    %v909 = vunpack.c.l.b16 %v872
    %v910 = vunpack.c.l.b16 %v873
    %v911 = vunpack.c.l.b16 %v874
    %v912 = vunpack.c.l.b16 %v875
    %v913 = vpack.c.b16 %v898, %v897
    %v914 = vpack.c.b16 %v900, %v899
    %v915 = vpack.c.b16 %v902, %v901
    %v916 = vpack.c.b16 %v904, %v903
    %v917 = vpack.c.b16 %v906, %v905
    %v918 = vpack.c.b16 %v908, %v907
    %v919 = vpack.c.b16 %v910, %v909
    %v920 = vpack.c.b16 %v912, %v911
    %929 = vmatprep.subr.bf16.mxu0 0
    %930 = vmatpush1.bf16.msra.mxu0 %v913
    %931 = vmatprep.subr.bf16.mxu0 0
    %932 = vmatpush1.bf16.msra.mxu0 %v914
    %933 = vmatprep.subr.bf16.mxu0 0
    %934 = vmatpush1.bf16.msra.mxu0 %v915
    %935 = vmatprep.subr.bf16.mxu0 0
    %936 = vmatpush1.bf16.msra.mxu0 %v916
    %937 = vmatprep.subr.bf16.mxu0 0
    %938 = vmatpush1.bf16.msra.mxu0 %v917
    %939 = vmatprep.subr.bf16.mxu0 0
    %940 = vmatpush1.bf16.msra.mxu0 %v918
    %941 = vmatprep.subr.bf16.mxu0 0
    %942 = vmatpush1.bf16.msra.mxu0 %v919
    %943 = vmatprep.subr.bf16.mxu0 0
    %944 = vmatpush1.bf16.msra.mxu0 %v920
    %945 = vmatprep.subr.bf16.mxu0 0
    %946 = vmatpush1.bf16.msra.mxu0 0
    %947 = vmatprep.subr.bf16.mxu0 0
    %948 = vmatpush1.bf16.msra.mxu0 0
    %949 = vmatprep.subr.bf16.mxu0 0
    %950 = vmatpush1.bf16.msra.mxu0 0
    %951 = vmatprep.subr.bf16.mxu0 0
    %952 = vmatpush1.bf16.msra.mxu0 0
    %953 = vmatprep.subr.bf16.mxu0 0
    %954 = vmatpush1.bf16.msra.mxu0 0
    %955 = vmatprep.subr.bf16.mxu0 0
    %956 = vmatpush1.bf16.msra.mxu0 0
    %957 = vmatprep.subr.bf16.mxu0 0
    %958 = vmatpush1.bf16.msra.mxu0 0
    %959 = vmatprep.subr.bf16.mxu0 0
    %960 = vmatpush1.bf16.msra.mxu0 0
    %961 = vmatprep.mubr.bf16.mxu0 0
    %962 = vmatmul.mubr.bf16.gmra.mrb[0].mxu0 %v859
    %v963 = vpop.f32.mrb[0].mxu0
    %v964 = vadd.f32 %v880, %v963
    %v965 = vpop.f32.mrb[0].mxu0
    %v966 = vpop.f32.mrb[0].mxu0
    %v967 = vadd.f32 %v880, %v966
    %v968 = vpop.f32.mrb[0].mxu0
    %969 = vdwg.mxu0
    %v970 = vld [vmem:[#allocation7 + $0x4] sm:$0x1]
    %vm971 = vcmp.ne.f32.partialorder %v970, 0.0
    %v972 = vmul.f32 %v964, 1.442695
    %v973 = vpow.pop %v972
    %v974 = vmul.f32 %v967, 1.442695
    %v975 = vpow.pop %v974
    %v976 = vsel %vm971, 1, 0
    %v977 = vlaneseq
    %v978 = vshrl.u32 %v977, 7
    %v979 = vsub.s32 0, %v978
    %v980 = vrot.slane %v976, %v979
    %vm981 = vcmp.eq.s32.totalorder %v980, 1
    %v982 = vsel %vm981, %v973, %v964
    %v983 = vsel %vm981, %v975, %v967
    %v984 = vpack.c.bf16 %v983, %v982
    %v986 = vunpack.c.l.b16 %v984
    %v987 = vunpack.c.h.b16 %v984
    %v988 = vpack.c.b16 %v986, %v986
    %v989 = vpack.c.b16 %v987, %v987
    %992 = vst [vmem:[#allocation10] sm:$0xf] %v988
    %993 = vst [vmem:[#allocation10 + $0x4] sm:$0xf] %v989
    // Predicated region
    $region34: #{tpu_custom_call.1} parent=1 // pred_check
      _
    $region35: #{tpu_custom_call.1} parent=1 // pred_check_branch
      %995 = sbr.rel (0) target = $region37
    $region36: #{tpu_custom_call.1} parent=1 // pred_region
      %s997 = ssub.s32 128, 128
      %998 = vsyncadd [#allocation4], %s997
      %s999 = sshll.u32 [#allocation10], 4
      %s1000 = int_to_ptr.vmem [resolvable:$true] %s999
      %1005 = dma.vmem_to_hbm [thread:$0]  %s1000, 128, %s4, [#allocation4], 64, 64, 4
    $region37: #{tpu_custom_call.1} parent=1 // pred_fallthru
      _
    // Predicated region
    $region38: #{tpu_custom_call.1} parent=1 // pred_check
      _
    $region39: #{tpu_custom_call.1} parent=1 // pred_check_branch
      %1007 = sbr.rel (0) target = $region41
    $region40: #{tpu_custom_call.1} parent=1 // pred_region
      %1008 = dma.done [#allocation4], 128
    $region41: #{tpu_custom_call.1} parent=1 // pred_fallthru
      _
    %1009 = vsyncpa [#allocation3], 1
    %1010 = vsyncpa [#allocation6], 1
    %1011 = vsyncpa [#allocation9], 1
    %1012 = vsyncpa [#allocation4], 1

</llo_original>
